<compile_context>
chip_gen: v7x
topology: tpu7x:2x2x1
jax: 0.10.0
libtpu: 0.0.40
codegen_flags: <defaults>
</compile_context>

<pallas_src>
import functools

import jax
import jax.numpy as jnp
from jax.experimental import pallas as pl
from jax.experimental.pallas import tpu as pltpu

_LANE = 128
_SUBLANE = 8
_TARGET_TILE_BYTES = 4 * 1024 * 1024     # ~4 MiB input block per grid step
_VMEM_LIMIT_BYTES = 48 * 1024 * 1024     # fits v7x's 64 MiB VMEM with headroom


def _round_up(n: int, m: int) -> int:
    return ((n + m - 1) // m) * m


def _decomp_kernel(x_ref, res_ref, ma_ref, *, kernel_size: int, L: int, C: int,
                   use_cumsum: bool):
    """x_ref: (bb, N) flattened (time*channel) block; res_ref / ma_ref: same."""
    N = x_ref.shape[-1]                      # lane width (>= L*C, 128-aligned)
    k = kernel_size
    front = (k - 1) // 2                     # left replication count (matches PyTorch)
    end = k // 2                             # right replication count
    inv_k = 1.0 / k
    out_dtype = ma_ref.dtype

    x = x_ref[...]
    xf = x.astype(jnp.float32)

    # (1, N) lane -> timestep map, broadcast over sublanes (no full-tile iota).
    lane = jax.lax.broadcasted_iota(jnp.int32, (1, N), 1)
    t_idx = lane // C

    if not use_cumsum:
        # ---- small-window path: k-1 clamped taps via XLU lane rolls --------
        is_first = lane < C                  # timestep 0
        is_last = lane >= (L - 1) * C        # timestep L-1 (and any lane padding)

        acc = xf                             # center tap, f32 accumulate
        # Forward taps (+1 .. +end), clamped at timestep L-1: hold-last recurrence.
        t = x
        for _ in range(end):
            t = jnp.where(is_last, t, pltpu.roll(t, shift=(N - C) % N, axis=1))
            acc = acc + t.astype(jnp.float32)
        # Backward taps (-1 .. -front), clamped at timestep 0.
        u = x
        for _ in range(front):
            u = jnp.where(is_first, u, pltpu.roll(u, shift=C % N, axis=1))
            acc = acc + u.astype(jnp.float32)

        ma = acc * inv_k
        ma_ref[...] = ma.astype(out_dtype)
        res_ref[...] = (xf - ma).astype(out_dtype)
        return

    # ---- cumsum sliding-window path (O(log L) full-width rolls) ------------
    # 1) Inclusive prefix sum along time (Hillis-Steele on flattened lanes).
    S = xf
    d = 1
    while d < L:
        S = S + jnp.where(t_idx >= d,
                          pltpu.roll(S, shift=(d * C) % N, axis=1), 0.0)
        d *= 2

    # 2) Bulk window sum: W[t] = S[t+end] - S[t-front-1], lower clamped to 0.
    lower = jnp.where(t_idx >= front + 1,
                      pltpu.roll(S, shift=((front + 1) * C) % N, axis=1), 0.0)
    upper = pltpu.roll(S, shift=(-end * C) % N, axis=1)   # valid for t <= L-1-end
    W = upper - lower
    ma = W * inv_k
    ma_ref[...] = ma.astype(out_dtype)
    res_ref[...] = (xf - ma).astype(out_dtype)

    # 3) Narrow boundary corrections (first `front` / last `end` timesteps only,
    #    each a C-lane wide slice -> negligible vs. the full-width work above).
    if front > 0:
        x0 = xf[:, 0:C]                                       # x[t=0]
        for tt in range(front):                               # left replication
            a, b = tt * C, (tt + 1) * C
            w_t = W[:, a:b] + float(front - tt) * x0
            ma_t = w_t * inv_k
            ma_ref[:, a:b] = ma_t.astype(out_dtype)
            res_ref[:, a:b] = (xf[:, a:b] - ma_t).astype(out_dtype)
    if end > 0:
        s_last = S[:, (L - 1) * C:L * C]                      # total sum per channel
        x_last = xf[:, (L - 1) * C:L * C]                     # x[t=L-1]
        for j in range(end):                                  # right replication
            tt = L - end + j
            a, b = tt * C, (tt + 1) * C
            w_t = s_last - lower[:, a:b] + float(j + 1) * x_last
            ma_t = w_t * inv_k
            ma_ref[:, a:b] = ma_t.astype(out_dtype)
            res_ref[:, a:b] = (xf[:, a:b] - ma_t).astype(out_dtype)


def _pick_block_batch(Bp: int, row_bytes: int,
                      target_bytes: int = _TARGET_TILE_BYTES) -> int:
    """Pick a batch block: multiple of 8 dividing Bp, ~target_bytes input tile,
    preferring >=4 grid steps (2 per v7x TensorCore) and an even step count."""
    cands = [d for d in range(_SUBLANE, Bp + 1, _SUBLANE) if Bp % d == 0]
    if not cands:
        return Bp
    fitting = [d for d in cands if d * row_bytes <= target_bytes] or [min(cands)]

    def score(d):
        steps = Bp // d
        return (steps >= 4, steps >= 2, steps % 2 == 0, d)

    return max(fitting, key=score)


def series_decomp(x: jax.Array, kernel_size: int):
    """Equivalent of PyTorch series_decomp.forward: returns (res, ma)."""
    B, L, C = x.shape
    LC = L * C
    x2 = x.reshape(B, LC)                     # free: contiguous row-major view

    # Pad lanes to a multiple of 128 and batch to a multiple of 8 so every block
    # is (8k, 128m): unmasked stores, aligned rolls.  No-op for aligned shapes.
    LCp = _round_up(LC, _LANE)
    Bp = _round_up(B, _SUBLANE)
    padded = (LCp != LC) or (Bp != B)
    if padded:
        x2 = jnp.pad(x2, ((0, Bp - B), (0, LCp - LC)))

    bb = _pick_block_batch(Bp, LCp * x.dtype.itemsize)
    grid = (Bp // bb,)

    # Cumsum path only when it actually reduces roll count vs. the k-1 taps.
    ceil_log2_L = (L - 1).bit_length()
    use_cumsum = (kernel_size >= 8) and (L >= kernel_size) and \
                 (kernel_size - 1 > ceil_log2_L + 3)

    kernel = functools.partial(_decomp_kernel, kernel_size=kernel_size, L=L, C=C,
                               use_cumsum=use_cumsum)

    res2, ma2 = pl.pallas_call(
        kernel,
        out_shape=(
            jax.ShapeDtypeStruct((Bp, LCp), x.dtype),
            jax.ShapeDtypeStruct((Bp, LCp), x.dtype),
        ),
        grid=grid,
        in_specs=[pl.BlockSpec((bb, LCp), lambda i: (i, 0))],
        out_specs=(
            pl.BlockSpec((bb, LCp), lambda i: (i, 0)),
            pl.BlockSpec((bb, LCp), lambda i: (i, 0)),
        ),
        compiler_params=pltpu.CompilerParams(
            dimension_semantics=("parallel",),
            vmem_limit_bytes=_VMEM_LIMIT_BYTES,
        ),
    )(x2)

    if padded:
        res2 = res2[:B, :LC]
        ma2 = ma2[:B, :LC]
    return res2.reshape(B, L, C), ma2.reshape(B, L, C)


def _reference(x, kernel_size):
    """Pure-JAX reference mirroring the PyTorch module exactly."""
    front = (kernel_size - 1) // 2
    end = kernel_size // 2
    x_pad = jnp.concatenate(
        [jnp.repeat(x[:, 0:1, :], front, axis=1), x,
         jnp.repeat(x[:, -1:, :], end, axis=1)],
        axis=1,
    )
    L = x.shape[1]
    windows = jnp.stack([x_pad[:, s:s + L, :] for s in range(kernel_size)], axis=0)
    ma = jnp.mean(windows, axis=0)
    return x - ma, ma


if __name__ == "__main__":
    key = jax.random.PRNGKey(0)

    # Small deterministic cases covering both compute paths and padding paths:
    #   (B, L, C, kernel_size)
    cases = [
        (2, 16, 8, 5),    # odd k  -> tap path, LC=128 aligned, B padded 2->8
        (4, 32, 4, 6),    # even k -> tap path
        (8, 64, 2, 25),   # typical k=25 -> cumsum path, LC=128 aligned
        (5, 40, 6, 15),   # cumsum path with ragged LC (240->256) and B (5->8)
        (3, 20, 7, 25),   # k > L -> tap path with ragged LC (140->256)
    ]
    for (B, L, C, ks) in cases:
        key, sub = jax.random.split(key)
        x = jax.random.normal(sub, (B, L, C), dtype=jnp.float32)

        res, ma = series_decomp(x, ks)
        res, ma = jax.block_until_ready((res, ma))

        res_ref, ma_ref = _reference(x, ks)
        assert res.shape == (B, L, C) and ma.shape == (B, L, C)
        assert jnp.allclose(ma, ma_ref, atol=1e-4, rtol=1e-4), ("ma", B, L, C, ks)
        assert jnp.allclose(res, res_ref, atol=1e-4, rtol=1e-4), ("res", B, L, C, ks)

    print("KERNEL_OK")
</pallas_src>

<mosaic_0001>
module attributes {stable_mosaic.version = 11 : i64} {
  func.func @_decomp_kernel(%arg0: i32, %arg1: memref<8x128xf32, #tpu.memory_space<vmem>>, %arg2: memref<8x128xf32, #tpu.memory_space<vmem>>, %arg3: memref<8x128xf32, #tpu.memory_space<vmem>>) attributes {dimension_semantics = [#tpu.dimension_semantics<parallel>], iteration_bounds = array<i64: 1>, scalar_prefetch = 0 : i64, scratch_operands = 0 : i64, tpu.core_type = #tpu.core_type<tc>, window_params = [{transform_indices = @transform_0, window_bounds = array<i64: 8, 128>}, {transform_indices = @transform_1, window_bounds = array<i64: 8, 128>}, {transform_indices = @transform_2, window_bounds = array<i64: 8, 128>}]} {
    %c0 = arith.constant 0 : index
    %c0_0 = arith.constant 0 : index
    %0 = vector.load %arg1[%c0, %c0_0] : memref<8x128xf32, #tpu.memory_space<vmem>>, vector<8x128xf32>
    %1 = tpu.iota {dimensions = array<i32: 1>} : vector<1x128xi32>
    %c8_i32 = arith.constant 8 : i32
    %2 = vector.broadcast %c8_i32 : i32 to vector<1x128xi32>
    %3 = arith.cmpi slt, %1, %2 : vector<1x128xi32>
    %c120_i32 = arith.constant 120 : i32
    %4 = vector.broadcast %c120_i32 : i32 to vector<1x128xi32>
    %5 = arith.cmpi sge, %1, %4 : vector<1x128xi32>
    %c120_i32_1 = arith.constant 120 : i32
    %6 = tpu.dynamic_rotate %0 by %c120_i32_1 dim 1 : vector<8x128xf32>, i32 -> vector<8x128xf32>
    %7 = vector.shape_cast %5 : vector<1x128xi1> to vector<1x128xi1>
    %8 = vector.broadcast %7 : vector<1x128xi1> to vector<8x128xi1>
    %9 = arith.select %8, %0, %6 : vector<8x128xi1>, vector<8x128xf32>
    %10 = arith.addf %0, %9 : vector<8x128xf32>
    %c120_i32_2 = arith.constant 120 : i32
    %11 = tpu.dynamic_rotate %9 by %c120_i32_2 dim 1 : vector<8x128xf32>, i32 -> vector<8x128xf32>
    %12 = vector.shape_cast %5 : vector<1x128xi1> to vector<1x128xi1>
    %13 = vector.broadcast %12 : vector<1x128xi1> to vector<8x128xi1>
    %14 = arith.select %13, %9, %11 : vector<8x128xi1>, vector<8x128xf32>
    %15 = arith.addf %10, %14 : vector<8x128xf32>
    %c8_i32_3 = arith.constant 8 : i32
    %16 = tpu.dynamic_rotate %0 by %c8_i32_3 dim 1 : vector<8x128xf32>, i32 -> vector<8x128xf32>
    %17 = vector.shape_cast %3 : vector<1x128xi1> to vector<1x128xi1>
    %18 = vector.broadcast %17 : vector<1x128xi1> to vector<8x128xi1>
    %19 = arith.select %18, %0, %16 : vector<8x128xi1>, vector<8x128xf32>
    %20 = arith.addf %15, %19 : vector<8x128xf32>
    %c8_i32_4 = arith.constant 8 : i32
    %21 = tpu.dynamic_rotate %19 by %c8_i32_4 dim 1 : vector<8x128xf32>, i32 -> vector<8x128xf32>
    %22 = vector.shape_cast %3 : vector<1x128xi1> to vector<1x128xi1>
    %23 = vector.broadcast %22 : vector<1x128xi1> to vector<8x128xi1>
    %24 = arith.select %23, %19, %21 : vector<8x128xi1>, vector<8x128xf32>
    %25 = arith.addf %20, %24 : vector<8x128xf32>
    %cst = arith.constant 2.000000e-01 : f32
    %26 = vector.broadcast %cst : f32 to vector<8x128xf32>
    %27 = arith.mulf %25, %26 : vector<8x128xf32>
    %c0_5 = arith.constant 0 : index
    %c0_6 = arith.constant 0 : index
    %28 = vector.load %arg3[%c0_5, %c0_6] : memref<8x128xf32, #tpu.memory_space<vmem>>, vector<8x128xf32>
    tpu.vector_store %arg3[%c0_5, %c0_6], %27 {strides = array<i32>} : memref<8x128xf32, #tpu.memory_space<vmem>>, vector<8x128xf32>,
    %29 = arith.subf %0, %27 : vector<8x128xf32>
    %c0_7 = arith.constant 0 : index
    %c0_8 = arith.constant 0 : index
    %30 = vector.load %arg2[%c0_7, %c0_8] : memref<8x128xf32, #tpu.memory_space<vmem>>, vector<8x128xf32>
    tpu.vector_store %arg2[%c0_7, %c0_8], %29 {strides = array<i32>} : memref<8x128xf32, #tpu.memory_space<vmem>>, vector<8x128xf32>,
    return
  }
  func.func @transform_0(%arg0: i32) -> (i32, i32) {
    %c0_i32 = arith.constant 0 : i32
    %c0_i32_0 = arith.constant 0 : i32
    return %arg0, %c0_i32 : i32, i32
  }
  func.func @transform_1(%arg0: i32) -> (i32, i32) {
    %c0_i32 = arith.constant 0 : i32
    %c0_i32_0 = arith.constant 0 : i32
    return %arg0, %c0_i32 : i32, i32
  }
  func.func @transform_2(%arg0: i32) -> (i32, i32) {
    %c0_i32 = arith.constant 0 : i32
    %c0_i32_0 = arith.constant 0 : i32
    return %arg0, %c0_i32 : i32, i32
  }
}

</mosaic_0001>

<llo_original>
// kernel: tpu_custom_call.1
$region0: #{tpu_custom_call.1}
  #allocation0 [shape = 'u32[]', space=smem, size = 0x4, offset = 0x4, fixed_abs, tag = 'smem constant byte address 0x4 - core index']
  #allocation1 [shape = 'u32[144,128]{1,0:T(1,128)}', space=vmem, size = 0x12000, scoped, tag = 'internal scratch']
  %s0 = inlined_call_operand.hbm [shape: f32[8,128], index: 0, kind: input, shape index: {}]
  %s1 = inlined_call_operand.hbm [shape: f32[8,128], index: 1, kind: output, shape index: {0}]
  %s2 = inlined_call_operand.hbm [shape: f32[8,128], index: 2, kind: output, shape index: {1}]
  %3 = xla_tuple %s1, %s2
  %s4 = sld [smem:[#allocation0]]
  $region26: #{tpu_custom_call.1} parent=0
    _
  %s6 = ssub.s32 1, %s4
  %s7 = scalar_select 0, %s6, %s4
  $region1: #{tpu_custom_call.1} parent=0
    #allocation2 [shape = 'u8[4096]{0}', space=vmem, size = 0x1000, scoped, tag = 'input window, operand 0, single buffered']
    #allocation3 [shape = 's32[1]{0}', space=sflag, size = 0x4, scoped, tag = 'scoped memory for tpu_custom_call.1']
    #allocation4 [shape = 's32[1]{0}', space=sflag, size = 0x4, scoped, tag = 'scoped memory for tpu_custom_call.1']
    #allocation5 [shape = 'u8[4096]{0}', space=vmem, size = 0x1000, scoped, tag = 'output window, operand 0, single buffered']
    #allocation6 [shape = 'u8[4096]{0}', space=vmem, size = 0x1000, scoped, tag = 'output window, operand 1, single buffered']
    #allocation7 [shape = 's32[1]{0}', space=sflag, size = 0x4, scoped, tag = 'scoped memory for tpu_custom_call.1']
    %8 = vsyncpa [#allocation3], 0
    %9 = vsyncpa [#allocation4], 0
    %10 = vsyncpa [#allocation7], 0
    // Predicated region
    $region2: #{tpu_custom_call.1} parent=1 // pred_check
      _
    $region3: #{tpu_custom_call.1} parent=1 // pred_check_branch
      %12 = sbr.rel (0) target = $region5
    $region4: #{tpu_custom_call.1} parent=1 // pred_region
      %s14 = ssub.s32 128, 128
      %15 = vsyncadd [#allocation3], %s14
      %s17 = sshll.u32 [#allocation2], 4
      %s18 = int_to_ptr.vmem [resolvable:$true] %s17
      %20 = dma.hbm_to_vmem [thread:$0]  %s0, 128, %s18, [#allocation3]
    $region5: #{tpu_custom_call.1} parent=1 // pred_fallthru
      _
    // Predicated region
    $region6: #{tpu_custom_call.1} parent=1 // pred_check
      _
    $region7: #{tpu_custom_call.1} parent=1 // pred_check_branch
      %22 = sbr.rel (0) target = $region9
    $region8: #{tpu_custom_call.1} parent=1 // pred_region
      %23 = dma.done [#allocation3], 128
    $region9: #{tpu_custom_call.1} parent=1 // pred_fallthru
      _
    %v24 = vld [vmem:[#allocation2] sm:$0xff]
    %v25 = vlaneseq
    %v26 = vand.u32 %v25, 127
    %vm27 = vcmp.lt.s32.totalorder %v26, 8
    %vm28 = vcmp.ge.s32.totalorder %v26, 120
    %29 = vrot.lane.b32.xlu0 %v24, 120
    %v30 = vpop.permute.xlu0 %29
    %v31 = vsel %vm28, 1, 0
    %vm32 = vcmp.eq.s32.totalorder %v31, 1
    %v33 = vsel %vm32, %v24, %v30
    %v34 = vadd.f32 %v24, %v33
    %35 = vrot.lane.b32.xlu0 %v33, 120
    %v36 = vpop.permute.xlu0 %35
    %v37 = vsel %vm32, %v24, %v36
    %v38 = vadd.f32 %v34, %v37
    %39 = vrot.lane.b32.xlu0 %v24, 8
    %v40 = vpop.permute.xlu0 %39
    %v41 = vsel %vm27, 1, 0
    %vm42 = vcmp.eq.s32.totalorder %v41, 1
    %v43 = vsel %vm42, %v24, %v40
    %v44 = vadd.f32 %v38, %v43
    %45 = vrot.lane.b32.xlu0 %v43, 8
    %v46 = vpop.permute.xlu0 %45
    %v47 = vsel %vm42, %v24, %v46
    %v48 = vadd.f32 %v44, %v47
    %v49 = vmul.f32 %v48, 0.2
    %50 = vst [vmem:[#allocation6] sm:$0xff] %v49
    %v51 = vsub.f32 %v24, %v49
    %52 = vst [vmem:[#allocation5] sm:$0xff] %v51
    // Predicated region
    $region10: #{tpu_custom_call.1} parent=1 // pred_check
      _
    $region11: #{tpu_custom_call.1} parent=1 // pred_check_branch
      %54 = sbr.rel (0) target = $region13
    $region12: #{tpu_custom_call.1} parent=1 // pred_region
      %s56 = ssub.s32 128, 128
      %57 = vsyncadd [#allocation4], %s56
      %s59 = sshll.u32 [#allocation5], 4
      %s60 = int_to_ptr.vmem [resolvable:$true] %s59
      %62 = dma.vmem_to_hbm [thread:$0]  %s60, 128, %s1, [#allocation4]
    $region13: #{tpu_custom_call.1} parent=1 // pred_fallthru
      _
    // Predicated region
    $region14: #{tpu_custom_call.1} parent=1 // pred_check
      _
    $region15: #{tpu_custom_call.1} parent=1 // pred_check_branch
      %64 = sbr.rel (0) target = $region17
    $region16: #{tpu_custom_call.1} parent=1 // pred_region
      %s66 = ssub.s32 128, 128
      %67 = vsyncadd [#allocation7], %s66
      %s69 = sshll.u32 [#allocation6], 4
      %s70 = int_to_ptr.vmem [resolvable:$true] %s69
      %72 = dma.vmem_to_hbm [thread:$0]  %s70, 128, %s2, [#allocation7]
    $region17: #{tpu_custom_call.1} parent=1 // pred_fallthru
      _
    // Predicated region
    $region18: #{tpu_custom_call.1} parent=1 // pred_check
      _
    $region19: #{tpu_custom_call.1} parent=1 // pred_check_branch
      %74 = sbr.rel (0) target = $region21
    $region20: #{tpu_custom_call.1} parent=1 // pred_region
      %75 = dma.done [#allocation4], 128
    $region21: #{tpu_custom_call.1} parent=1 // pred_fallthru
      _
    // Predicated region
    $region22: #{tpu_custom_call.1} parent=1 // pred_check
      _
    $region23: #{tpu_custom_call.1} parent=1 // pred_check_branch
      %77 = sbr.rel (0) target = $region25
    $region24: #{tpu_custom_call.1} parent=1 // pred_region
      %78 = dma.done [#allocation7], 128
    $region25: #{tpu_custom_call.1} parent=1 // pred_fallthru
      _
    %79 = vsyncpa [#allocation3], 1
    %80 = vsyncpa [#allocation4], 1
    %81 = vsyncpa [#allocation7], 1

</llo_original>
